<compile_context>
chip_gen: v7x
topology: tpu7x:2x2x1
jax: 0.10.0
libtpu: 0.0.40
codegen_flags: <defaults>
</compile_context>

<pallas_src>
import functools

import jax
import jax.numpy as jnp
from jax.experimental import pallas as pl
from jax.experimental.pallas import tpu as pltpu

SMOOTH_NR = 1e-6   # from module __init__
SMOOTH_DR = 1e-5   # MONAI DiceCELoss default
LAMBDA_DICE = 1.0
LAMBDA_CE = 1.0
DEFAULT_TILE_HW = 2048  # lanes per grid step (multiple of 128); sweep 2048-8192


def _dice_ce_kernel(x_ref, t_ref, o_ref,
                    inter_acc, t_acc, p_acc, ce_acc,
                    *, hw_total, tile_hw, needs_mask, num_bc, ce_count):
    # x_ref, t_ref : (B, C, tile_hw) blocks in VMEM (native dtype)
    # o_ref        : (1, 1) f32 output (written only on the last grid step)
    # inter_acc/t_acc/p_acc : (B, C, 1) f32 VMEM scratch accumulators
    # ce_acc       : (1, 1) f32 VMEM scratch accumulator
    k = pl.program_id(0)

    @pl.when(k == 0)
    def _init():
        inter_acc[...] = jnp.zeros_like(inter_acc)
        t_acc[...] = jnp.zeros_like(t_acc)
        p_acc[...] = jnp.zeros_like(p_acc)
        ce_acc[...] = jnp.zeros_like(ce_acc)

    # Cast to f32 in-register after the DMA (inputs may be bf16 in HBM).
    x = x_ref[...].astype(jnp.float32)
    t = t_ref[...].astype(jnp.float32)

    if needs_mask:
        # Mask lanes past the true spatial extent on the (possibly OOB) tail tile.
        col = jax.lax.broadcasted_iota(jnp.int32, x.shape, dimension=2)
        valid = (col + k * tile_hw) < hw_total
        x = jnp.where(valid, x, 0.0)   # padded lanes -> well-defined logits
        t = jnp.where(valid, t, 0.0)   # padded lanes contribute 0 to t-sums / CE
        maskf = valid.astype(jnp.float32)
    else:
        maskf = None

    # ---- Dice partial sums (sigmoid activation, reduce over the lane axis) ----
    # sigmoid via EUP exp + approx reciprocal (single vrcp push; ~1e-3 rel err).
    p = pl.reciprocal(1.0 + jnp.exp(-x), approx=True)
    if maskf is not None:
        p = p * maskf                  # exclude padded lanes from sum(p)

    inter_acc[...] += jnp.sum(t * p, axis=-1, keepdims=True)   # (B, C, 1)
    t_acc[...] += jnp.sum(t, axis=-1, keepdims=True)
    p_acc[...] += jnp.sum(p, axis=-1, keepdims=True)

    # ---- Soft-target cross entropy over the channel (sublane) axis ----
    m = jnp.max(x, axis=1, keepdims=True)                       # (B, 1, tile)
    lse = m + jnp.log(jnp.sum(jnp.exp(x - m), axis=1, keepdims=True))
    logp = x - lse                                              # log_softmax
    ce_tile = -jnp.sum(t * logp)                                # scalar (t==0 on pad)
    ce_acc[...] += jnp.full((1, 1), ce_tile, dtype=jnp.float32)

    # ---- Finalize on the last grid step ----
    @pl.when(k == pl.num_programs(0) - 1)
    def _finalize():
        inter = inter_acc[...]                                  # (B, C, 1)
        denom = t_acc[...] + p_acc[...] + SMOOTH_DR
        dice = 1.0 - (2.0 * inter + SMOOTH_NR) / denom
        dice_loss = jnp.sum(dice) * (1.0 / num_bc)              # mean over (B, C)
        ce_loss = jnp.sum(ce_acc[...]) * (1.0 / ce_count)       # mean over B*HW
        total = LAMBDA_DICE * dice_loss + LAMBDA_CE * ce_loss
        o_ref[...] = jnp.full((1, 1), total, dtype=jnp.float32)


def dice_ce_loss(output_nchw, target_nchw, *, tile_hw=DEFAULT_TILE_HW):
    """output_nchw, target_nchw: (B, C, H, W). Returns scalar float32 loss."""
    B, C, H, W = output_nchw.shape
    HW = H * W

    # Keep native dtypes in HBM; the kernel casts to f32 after the DMA.
    x = output_nchw.reshape(B, C, HW)
    t = target_nchw.reshape(B, C, HW)

    # Tile the spatial axis: either the full extent (small images) or a
    # lane-aligned tile (multiple of 128) for pipelined streaming.
    tile_hw = max(128, (int(tile_hw) // 128) * 128)
    tile = HW if HW <= tile_hw else tile_hw
    grid = (pl.cdiv(HW, tile),)
    needs_mask = (HW % tile) != 0

    kernel = functools.partial(
        _dice_ce_kernel,
        hw_total=HW, tile_hw=tile, needs_mask=needs_mask,
        num_bc=B * C, ce_count=B * HW)

    grid_spec = pltpu.PrefetchScalarGridSpec(
        num_scalar_prefetch=0,
        grid=grid,
        in_specs=[
            pl.BlockSpec((B, C, tile), lambda k: (0, 0, k)),
            pl.BlockSpec((B, C, tile), lambda k: (0, 0, k)),
        ],
        out_specs=pl.BlockSpec((1, 1), lambda k: (0, 0)),
        scratch_shapes=[
            pltpu.VMEM((B, C, 1), jnp.float32),   # sum(t*p)
            pltpu.VMEM((B, C, 1), jnp.float32),   # sum(t)
            pltpu.VMEM((B, C, 1), jnp.float32),   # sum(p)
            pltpu.VMEM((1, 1), jnp.float32),      # CE pixel-sum
        ],
    )

    out = pl.pallas_call(
        kernel,
        grid_spec=grid_spec,
        out_shape=jax.ShapeDtypeStruct((1, 1), jnp.float32),
        compiler_params=pltpu.CompilerParams(
            dimension_semantics=("arbitrary",),   # spatial axis is a reduction
        ),
    )(x, t)
    return out[0, 0]


def _reference_loss(output_nchw, target_nchw):
    """Pure-JAX reference (same math, exact sigmoid) for sanity checking."""
    x = output_nchw.astype(jnp.float32)
    t = target_nchw.astype(jnp.float32)
    p = jax.nn.sigmoid(x)
    inter = jnp.sum(t * p, axis=(2, 3))
    denom = jnp.sum(t, axis=(2, 3)) + jnp.sum(p, axis=(2, 3))
    dice = 1.0 - (2.0 * inter + SMOOTH_NR) / (denom + SMOOTH_DR)
    dice_loss = jnp.mean(dice)
    logp = jax.nn.log_softmax(x, axis=1)
    ce_loss = jnp.mean(-jnp.sum(t * logp, axis=1))
    return LAMBDA_DICE * dice_loss + LAMBDA_CE * ce_loss


if __name__ == "__main__":
    key = jax.random.PRNGKey(0)
    k1, k2, k3, k4 = jax.random.split(key, 4)

    # Case 1: B=2, C=4, 16x16 -> HW=256.
    B, C, H, W = 2, 4, 16, 16
    logits = jax.random.normal(k1, (B, C, H, W), dtype=jnp.float32)
    classes = jax.random.randint(k2, (B, H, W), 0, C)
    target = jnp.transpose(jax.nn.one_hot(classes, C, dtype=jnp.float32),
                           (0, 3, 1, 2))                       # NCHW one-hot

    loss_full = dice_ce_loss(logits, target)                   # single full-HW tile
    loss_tiled = dice_ce_loss(logits, target, tile_hw=128)     # grid=(2,), accumulation path
    ref = _reference_loss(logits, target)
    jax.block_until_ready((loss_full, loss_tiled))

    assert loss_full.shape == () and bool(jnp.isfinite(loss_full))
    assert abs(float(loss_full) - float(ref)) < 3e-2, (float(loss_full), float(ref))
    assert abs(float(loss_tiled) - float(ref)) < 3e-2, (float(loss_tiled), float(ref))

    # Case 2: 18x18 -> HW=324, tile=128 -> grid=(3,) with a masked tail tile.
    B2, C2, H2, W2 = 2, 4, 18, 18
    logits2 = jax.random.normal(k3, (B2, C2, H2, W2), dtype=jnp.float32)
    classes2 = jax.random.randint(k4, (B2, H2, W2), 0, C2)
    target2 = jnp.transpose(jax.nn.one_hot(classes2, C2, dtype=jnp.float32),
                            (0, 3, 1, 2))

    loss_masked = dice_ce_loss(logits2, target2, tile_hw=128)
    ref2 = _reference_loss(logits2, target2)
    jax.block_until_ready(loss_masked)

    assert bool(jnp.isfinite(loss_masked))
    assert abs(float(loss_masked) - float(ref2)) < 3e-2, (float(loss_masked), float(ref2))

    print("KERNEL_OK")
</pallas_src>

<mosaic_0001>
module attributes {stable_mosaic.version = 11 : i64} {
  func.func @_dice_ce_kernel(%arg0: i32, %arg1: memref<2x4x256xf32, #tpu.memory_space<vmem>>, %arg2: memref<2x4x256xf32, #tpu.memory_space<vmem>>, %arg3: memref<1x1xf32, #tpu.memory_space<vmem>>, %arg4: memref<2x4x1xf32, #tpu.memory_space<vmem>>, %arg5: memref<2x4x1xf32, #tpu.memory_space<vmem>>, %arg6: memref<2x4x1xf32, #tpu.memory_space<vmem>>, %arg7: memref<1x1xf32, #tpu.memory_space<vmem>>) attributes {dimension_semantics = [#tpu.dimension_semantics<arbitrary>], iteration_bounds = array<i64: 1>, scalar_prefetch = 0 : i64, scratch_operands = 4 : i64, tpu.core_type = #tpu.core_type<tc>, window_params = [{transform_indices = @transform_0, window_bounds = array<i64: 2, 4, 256>}, {transform_indices = @transform_1, window_bounds = array<i64: 2, 4, 256>}, {pipeline_mode = #tpu.pipeline_mode<synchronous>, transform_indices = @transform_2, window_bounds = array<i64: 1, 1>}]} {
    %c0_i32 = arith.constant 0 : i32
    %0 = arith.cmpi eq, %arg0, %c0_i32 : i32
    %1 = arith.extui %0 : i1 to i32
    %c0_i32_0 = arith.constant 0 : i32
    %2 = arith.cmpi ne, %1, %c0_i32_0 : i32
    scf.if %2 {
      %cst_38 = arith.constant 0.000000e+00 : f32
      %51 = vector.broadcast %cst_38 : f32 to vector<2x4x1xf32>
      %c0_39 = arith.constant 0 : index
      %c0_40 = arith.constant 0 : index
      %c0_41 = arith.constant 0 : index
      %52 = vector.load %arg4[%c0_39, %c0_40, %c0_41] : memref<2x4x1xf32, #tpu.memory_space<vmem>>, vector<2x4x1xf32>
      tpu.vector_store %arg4[%c0_39, %c0_40, %c0_41], %51 {strides = array<i32>} : memref<2x4x1xf32, #tpu.memory_space<vmem>>, vector<2x4x1xf32>,
      %cst_42 = arith.constant 0.000000e+00 : f32
      %53 = vector.broadcast %cst_42 : f32 to vector<2x4x1xf32>
      %c0_43 = arith.constant 0 : index
      %c0_44 = arith.constant 0 : index
      %c0_45 = arith.constant 0 : index
      %54 = vector.load %arg5[%c0_43, %c0_44, %c0_45] : memref<2x4x1xf32, #tpu.memory_space<vmem>>, vector<2x4x1xf32>
      tpu.vector_store %arg5[%c0_43, %c0_44, %c0_45], %53 {strides = array<i32>} : memref<2x4x1xf32, #tpu.memory_space<vmem>>, vector<2x4x1xf32>,
      %cst_46 = arith.constant 0.000000e+00 : f32
      %55 = vector.broadcast %cst_46 : f32 to vector<2x4x1xf32>
      %c0_47 = arith.constant 0 : index
      %c0_48 = arith.constant 0 : index
      %c0_49 = arith.constant 0 : index
      %56 = vector.load %arg6[%c0_47, %c0_48, %c0_49] : memref<2x4x1xf32, #tpu.memory_space<vmem>>, vector<2x4x1xf32>
      tpu.vector_store %arg6[%c0_47, %c0_48, %c0_49], %55 {strides = array<i32>} : memref<2x4x1xf32, #tpu.memory_space<vmem>>, vector<2x4x1xf32>,
      %cst_50 = arith.constant 0.000000e+00 : f32
      %57 = vector.broadcast %cst_50 : f32 to vector<1x1xf32>
      %c0_51 = arith.constant 0 : index
      %c0_52 = arith.constant 0 : index
      %58 = vector.load %arg7[%c0_51, %c0_52] : memref<1x1xf32, #tpu.memory_space<vmem>>, vector<1x1xf32>
      tpu.vector_store %arg7[%c0_51, %c0_52], %57 {strides = array<i32>} : memref<1x1xf32, #tpu.memory_space<vmem>>, vector<1x1xf32>,
    } else {
    }
    %c0 = arith.constant 0 : index
    %c0_1 = arith.constant 0 : index
    %c0_2 = arith.constant 0 : index
    %3 = vector.load %arg1[%c0, %c0_1, %c0_2] : memref<2x4x256xf32, #tpu.memory_space<vmem>>, vector<2x4x256xf32>
    %c0_3 = arith.constant 0 : index
    %c0_4 = arith.constant 0 : index
    %c0_5 = arith.constant 0 : index
    %4 = vector.load %arg2[%c0_3, %c0_4, %c0_5] : memref<2x4x256xf32, #tpu.memory_space<vmem>>, vector<2x4x256xf32>
    %cst = arith.constant 0.000000e+00 : f32
    %5 = vector.broadcast %cst : f32 to vector<2x4x256xf32>
    %6 = arith.subf %5, %3 : vector<2x4x256xf32>
    %7 = math.exp %6 : vector<2x4x256xf32>
    %cst_6 = arith.constant 1.000000e+00 : f32
    %8 = vector.broadcast %cst_6 : f32 to vector<2x4x256xf32>
    %9 = arith.addf %8, %7 : vector<2x4x256xf32>
    %10 = tpu.reciprocal %9 {approx = true} : vector<2x4x256xf32> -> vector<2x4x256xf32>
    %c0_7 = arith.constant 0 : index
    %c0_8 = arith.constant 0 : index
    %c0_9 = arith.constant 0 : index
    %11 = vector.load %arg4[%c0_7, %c0_8, %c0_9] : memref<2x4x1xf32, #tpu.memory_space<vmem>>, vector<2x4x1xf32>
    %12 = arith.mulf %4, %10 : vector<2x4x256xf32>
    %cst_10 = arith.constant dense<0.000000e+00> : vector<2x4xf32>
    %13 = vector.multi_reduction <add>, %12, %cst_10 [2] : vector<2x4x256xf32> to vector<2x4xf32>
    %14 = vector.shape_cast %13 : vector<2x4xf32> to vector<2x4x1xf32>
    %15 = arith.addf %11, %14 : vector<2x4x1xf32>
    %c0_11 = arith.constant 0 : index
    %c0_12 = arith.constant 0 : index
    %c0_13 = arith.constant 0 : index
    %16 = vector.load %arg4[%c0_11, %c0_12, %c0_13] : memref<2x4x1xf32, #tpu.memory_space<vmem>>, vector<2x4x1xf32>
    tpu.vector_store %arg4[%c0_11, %c0_12, %c0_13], %15 {strides = array<i32>} : memref<2x4x1xf32, #tpu.memory_space<vmem>>, vector<2x4x1xf32>,
    %c0_14 = arith.constant 0 : index
    %c0_15 = arith.constant 0 : index
    %c0_16 = arith.constant 0 : index
    %17 = vector.load %arg5[%c0_14, %c0_15, %c0_16] : memref<2x4x1xf32, #tpu.memory_space<vmem>>, vector<2x4x1xf32>
    %cst_17 = arith.constant dense<0.000000e+00> : vector<2x4xf32>
    %18 = vector.multi_reduction <add>, %4, %cst_17 [2] : vector<2x4x256xf32> to vector<2x4xf32>
    %19 = vector.shape_cast %18 : vector<2x4xf32> to vector<2x4x1xf32>
    %20 = arith.addf %17, %19 : vector<2x4x1xf32>
    %c0_18 = arith.constant 0 : index
    %c0_19 = arith.constant 0 : index
    %c0_20 = arith.constant 0 : index
    %21 = vector.load %arg5[%c0_18, %c0_19, %c0_20] : memref<2x4x1xf32, #tpu.memory_space<vmem>>, vector<2x4x1xf32>
    tpu.vector_store %arg5[%c0_18, %c0_19, %c0_20], %20 {strides = array<i32>} : memref<2x4x1xf32, #tpu.memory_space<vmem>>, vector<2x4x1xf32>,
    %c0_21 = arith.constant 0 : index
    %c0_22 = arith.constant 0 : index
    %c0_23 = arith.constant 0 : index
    %22 = vector.load %arg6[%c0_21, %c0_22, %c0_23] : memref<2x4x1xf32, #tpu.memory_space<vmem>>, vector<2x4x1xf32>
    %cst_24 = arith.constant dense<0.000000e+00> : vector<2x4xf32>
    %23 = vector.multi_reduction <add>, %10, %cst_24 [2] : vector<2x4x256xf32> to vector<2x4xf32>
    %24 = vector.shape_cast %23 : vector<2x4xf32> to vector<2x4x1xf32>
    %25 = arith.addf %22, %24 : vector<2x4x1xf32>
    %c0_25 = arith.constant 0 : index
    %c0_26 = arith.constant 0 : index
    %c0_27 = arith.constant 0 : index
    %26 = vector.load %arg6[%c0_25, %c0_26, %c0_27] : memref<2x4x1xf32, #tpu.memory_space<vmem>>, vector<2x4x1xf32>
    tpu.vector_store %arg6[%c0_25, %c0_26, %c0_27], %25 {strides = array<i32>} : memref<2x4x1xf32, #tpu.memory_space<vmem>>, vector<2x4x1xf32>,
    %cst_28 = arith.constant dense<0xFF800000> : vector<2x256xf32>
    %27 = vector.multi_reduction <maximumf>, %3, %cst_28 [1] : vector<2x4x256xf32> to vector<2x256xf32>
    %28 = vector.shape_cast %27 : vector<2x256xf32> to vector<2x1x256xf32>
    %29 = vector.broadcast %28 : vector<2x1x256xf32> to vector<2x4x256xf32>
    %30 = arith.subf %3, %29 : vector<2x4x256xf32>
    %31 = math.exp %30 : vector<2x4x256xf32>
    %cst_29 = arith.constant dense<0.000000e+00> : vector<2x256xf32>
    %32 = vector.multi_reduction <add>, %31, %cst_29 [1] : vector<2x4x256xf32> to vector<2x256xf32>
    %33 = vector.shape_cast %32 : vector<2x256xf32> to vector<2x1x256xf32>
    %34 = math.log %33 : vector<2x1x256xf32>
    %35 = arith.addf %28, %34 : vector<2x1x256xf32>
    %36 = vector.broadcast %35 : vector<2x1x256xf32> to vector<2x4x256xf32>
    %37 = arith.subf %3, %36 : vector<2x4x256xf32>
    %38 = arith.mulf %4, %37 : vector<2x4x256xf32>
    %39 = vector.shape_cast %38 : vector<2x4x256xf32> to vector<1x2x4x256xf32>
    %cst_30 = arith.constant dense<0.000000e+00> : vector<1xf32>
    %40 = vector.multi_reduction <add>, %39, %cst_30 [1, 2, 3] : vector<1x2x4x256xf32> to vector<1xf32>
    %41 = vector.shape_cast %40 : vector<1xf32> to vector<1x1x1x1xf32>
    %42 = vector.extract %41[0, 0, 0, 0] : f32 from vector<1x1x1x1xf32>
    %cst_31 = arith.constant 0.000000e+00 : f32
    %43 = arith.subf %cst_31, %42 : f32
    %c0_32 = arith.constant 0 : index
    %c0_33 = arith.constant 0 : index
    %44 = vector.load %arg7[%c0_32, %c0_33] : memref<1x1xf32, #tpu.memory_space<vmem>>, vector<1x1xf32>
    %45 = vector.broadcast %43 : f32 to vector<1x1xf32>
    %46 = arith.addf %44, %45 : vector<1x1xf32>
    %c0_34 = arith.constant 0 : index
    %c0_35 = arith.constant 0 : index
    %47 = vector.load %arg7[%c0_34, %c0_35] : memref<1x1xf32, #tpu.memory_space<vmem>>, vector<1x1xf32>
    tpu.vector_store %arg7[%c0_34, %c0_35], %46 {strides = array<i32>} : memref<1x1xf32, #tpu.memory_space<vmem>>, vector<1x1xf32>,
    %c0_i32_36 = arith.constant 0 : i32
    %48 = arith.cmpi eq, %arg0, %c0_i32_36 : i32
    %49 = arith.extui %48 : i1 to i32
    %c0_i32_37 = arith.constant 0 : i32
    %50 = arith.cmpi ne, %49, %c0_i32_37 : i32
    scf.if %50 {
      %c0_38 = arith.constant 0 : index
      %c0_39 = arith.constant 0 : index
      %c0_40 = arith.constant 0 : index
      %51 = vector.load %arg4[%c0_38, %c0_39, %c0_40] : memref<2x4x1xf32, #tpu.memory_space<vmem>>, vector<2x4x1xf32>
      %c0_41 = arith.constant 0 : index
      %c0_42 = arith.constant 0 : index
      %c0_43 = arith.constant 0 : index
      %52 = vector.load %arg5[%c0_41, %c0_42, %c0_43] : memref<2x4x1xf32, #tpu.memory_space<vmem>>, vector<2x4x1xf32>
      %c0_44 = arith.constant 0 : index
      %c0_45 = arith.constant 0 : index
      %c0_46 = arith.constant 0 : index
      %53 = vector.load %arg6[%c0_44, %c0_45, %c0_46] : memref<2x4x1xf32, #tpu.memory_space<vmem>>, vector<2x4x1xf32>
      %54 = arith.addf %52, %53 : vector<2x4x1xf32>
      %cst_47 = arith.constant 9.99999974E-6 : f32
      %55 = vector.broadcast %cst_47 : f32 to vector<2x4x1xf32>
      %56 = arith.addf %54, %55 : vector<2x4x1xf32>
      %cst_48 = arith.constant 2.000000e+00 : f32
      %57 = vector.broadcast %cst_48 : f32 to vector<2x4x1xf32>
      %58 = arith.mulf %57, %51 : vector<2x4x1xf32>
      %cst_49 = arith.constant 9.99999997E-7 : f32
      %59 = vector.broadcast %cst_49 : f32 to vector<2x4x1xf32>
      %60 = arith.addf %58, %59 : vector<2x4x1xf32>
      %61 = arith.divf %60, %56 : vector<2x4x1xf32>
      %cst_50 = arith.constant 1.000000e+00 : f32
      %62 = vector.broadcast %cst_50 : f32 to vector<2x4x1xf32>
      %63 = arith.subf %62, %61 : vector<2x4x1xf32>
      %64 = vector.shape_cast %63 : vector<2x4x1xf32> to vector<1x2x4x1xf32>
      %cst_51 = arith.constant dense<0.000000e+00> : vector<1xf32>
      %65 = vector.multi_reduction <add>, %64, %cst_51 [1, 2, 3] : vector<1x2x4x1xf32> to vector<1xf32>
      %66 = vector.shape_cast %65 : vector<1xf32> to vector<1x1x1x1xf32>
      %67 = vector.extract %66[0, 0, 0, 0] : f32 from vector<1x1x1x1xf32>
      %cst_52 = arith.constant 1.250000e-01 : f32
      %68 = arith.mulf %67, %cst_52 : f32
      %c0_53 = arith.constant 0 : index
      %c0_54 = arith.constant 0 : index
      %69 = vector.load %arg7[%c0_53, %c0_54] : memref<1x1xf32, #tpu.memory_space<vmem>>, vector<1x1xf32>
      %70 = vector.shape_cast %69 : vector<1x1xf32> to vector<1x1x1xf32>
      %cst_55 = arith.constant dense<0.000000e+00> : vector<1xf32>
      %71 = vector.multi_reduction <add>, %70, %cst_55 [1, 2] : vector<1x1x1xf32> to vector<1xf32>
      %72 = vector.shape_cast %71 : vector<1xf32> to vector<1x1x1xf32>
      %73 = vector.extract %72[0, 0, 0] : f32 from vector<1x1x1xf32>
      %cst_56 = arith.constant 0.001953125 : f32
      %74 = arith.mulf %73, %cst_56 : f32
      %cst_57 = arith.constant 1.000000e+00 : f32
      %75 = arith.mulf %cst_57, %68 : f32
      %cst_58 = arith.constant 1.000000e+00 : f32
      %76 = arith.mulf %cst_58, %74 : f32
      %77 = arith.addf %75, %76 : f32
      %78 = vector.broadcast %77 : f32 to vector<1x1xf32>
      %c0_59 = arith.constant 0 : index
      %c0_60 = arith.constant 0 : index
      %79 = vector.load %arg3[%c0_59, %c0_60] : memref<1x1xf32, #tpu.memory_space<vmem>>, vector<1x1xf32>
      tpu.vector_store %arg3[%c0_59, %c0_60], %78 {strides = array<i32>} : memref<1x1xf32, #tpu.memory_space<vmem>>, vector<1x1xf32>,
    } else {
    }
    return
  }
  func.func @transform_0(%arg0: i32) -> (i32, i32, i32) {
    %c0_i32 = arith.constant 0 : i32
    %c0_i32_0 = arith.constant 0 : i32
    %c0_i32_1 = arith.constant 0 : i32
    return %c0_i32, %c0_i32_0, %arg0 : i32, i32, i32
  }
  func.func @transform_1(%arg0: i32) -> (i32, i32, i32) {
    %c0_i32 = arith.constant 0 : i32
    %c0_i32_0 = arith.constant 0 : i32
    %c0_i32_1 = arith.constant 0 : i32
    return %c0_i32, %c0_i32_0, %arg0 : i32, i32, i32
  }
  func.func @transform_2(%arg0: i32) -> (i32, i32) {
    %c0_i32 = arith.constant 0 : i32
    %c0_i32_0 = arith.constant 0 : i32
    %c0_i32_1 = arith.constant 0 : i32
    return %c0_i32, %c0_i32_0 : i32, i32
  }
}

</mosaic_0001>

<llo_original>
// kernel: tpu_custom_call.1
$region0: #{tpu_custom_call.1}
  #allocation0 [shape = 'u32[]', space=smem, size = 0x4, offset = 0x4, fixed_abs, tag = 'smem constant byte address 0x4 - core index']
  #allocation1 [shape = 'u32[144,128]{1,0:T(1,128)}', space=vmem, size = 0x12000, scoped, tag = 'internal scratch']
  #allocation2 [shape = 'f32[2,4,1]{2,1,0:T(4,128)}', space=vmem, size = 0x1000, scoped, tag = 'scratch operand']
  #allocation3 [shape = 'f32[2,4,1]{2,1,0:T(4,128)}', space=vmem, size = 0x1000, scoped, tag = 'scratch operand']
  #allocation4 [shape = 'f32[2,4,1]{2,1,0:T(4,128)}', space=vmem, size = 0x1000, scoped, tag = 'scratch operand']
  #allocation5 [shape = 'f32[1,1]{1,0:T(1,128)}', space=vmem, size = 0x200, scoped, tag = 'scratch operand']
  %s0 = inlined_call_operand.hbm [shape: f32[2,4,256], index: 0, kind: input, shape index: {}]
  %s1 = inlined_call_operand.hbm [shape: f32[2,4,256], index: 1, kind: input, shape index: {}]
  %s2 = inlined_call_operand.hbm [shape: f32[1,1], index: 2, kind: output, shape index: {}]
  %s3 = sld [smem:[#allocation0]]
  $region34: #{tpu_custom_call.1} parent=0
    _
  %s5 = ssub.s32 1, %s3
  %s6 = scalar_select 0, %s5, %s3
  $region1: #{tpu_custom_call.1} parent=0
    #allocation6 [shape = 'u8[8192]{0}', space=vmem, size = 0x2000, scoped, tag = 'input window, operand 0, single buffered']
    #allocation7 [shape = 's32[1]{0}', space=sflag, size = 0x4, scoped, tag = 'scoped memory for tpu_custom_call.1']
    #allocation8 [shape = 's32[1]{0}', space=sflag, size = 0x4, scoped, tag = 'scoped memory for tpu_custom_call.1']
    #allocation9 [shape = 'u8[8192]{0}', space=vmem, size = 0x2000, scoped, tag = 'input window, operand 1, single buffered']
    #allocation10 [shape = 's32[1]{0}', space=sflag, size = 0x4, scoped, tag = 'scoped memory for tpu_custom_call.1']
    #allocation11 [shape = 'u8[512]{0}', space=vmem, size = 0x400, scoped, tag = 'output window, operand 0, single buffered']
    %7 = vsyncpa [#allocation7], 0
    %8 = vsyncpa [#allocation10], 0
    %9 = vsyncpa [#allocation8], 0
    // Predicated region
    $region2: #{tpu_custom_call.1} parent=1 // pred_check
      _
    $region3: #{tpu_custom_call.1} parent=1 // pred_check_branch
      %11 = sbr.rel (0) target = $region5
    $region4: #{tpu_custom_call.1} parent=1 // pred_region
      %s13 = ssub.s32 256, 256
      %14 = vsyncadd [#allocation7], %s13
      %s15 = sshll.u32 [#allocation6], 4
      %s16 = int_to_ptr.vmem [resolvable:$true] %s15
      %21 = dma.hbm_to_vmem [thread:$0]  %s0, 256, %s16, [#allocation7], 128, 128, 8
    $region5: #{tpu_custom_call.1} parent=1 // pred_fallthru
      _
    // Predicated region
    $region6: #{tpu_custom_call.1} parent=1 // pred_check
      _
    $region7: #{tpu_custom_call.1} parent=1 // pred_check_branch
      %23 = sbr.rel (0) target = $region9
    $region8: #{tpu_custom_call.1} parent=1 // pred_region
      %s25 = ssub.s32 256, 256
      %26 = vsyncadd [#allocation10], %s25
      %s27 = sshll.u32 [#allocation9], 4
      %s28 = int_to_ptr.vmem [resolvable:$true] %s27
      %33 = dma.hbm_to_vmem [thread:$0]  %s1, 256, %s28, [#allocation10], 128, 128, 8
    $region9: #{tpu_custom_call.1} parent=1 // pred_fallthru
      _
    // Predicated region
    $region10: #{tpu_custom_call.1} parent=1 // pred_check
      _
    $region11: #{tpu_custom_call.1} parent=1 // pred_check_branch
      %35 = sbr.rel (0) target = $region13
    $region12: #{tpu_custom_call.1} parent=1 // pred_region
      %36 = dma.done [#allocation7], 256
    $region13: #{tpu_custom_call.1} parent=1 // pred_fallthru
      _
    // Predicated region
    $region14: #{tpu_custom_call.1} parent=1 // pred_check
      _
    $region15: #{tpu_custom_call.1} parent=1 // pred_check_branch
      %38 = sbr.rel (0) target = $region17
    $region16: #{tpu_custom_call.1} parent=1 // pred_region
      %39 = dma.done [#allocation10], 256
    $region17: #{tpu_custom_call.1} parent=1 // pred_fallthru
      _
    %p40 = scmp.eq.s32.totalorder 0, 0
    // Predicated region
    $region18: #{tpu_custom_call.1} parent=1 // pred_check
      %p41 = pneg %p40
    $region19: #{tpu_custom_call.1} parent=1 // pred_check_branch
      %43 = sbr.rel (%p41) target = $region21
    $region20: #{tpu_custom_call.1} parent=1 // pred_region
      %vm44 = vcmask 3072
      %45 = vst.msk [vmem:[#allocation2] sm:$0xf] %vm44, 0.0
      %46 = vst.msk [vmem:[#allocation2 + $0x4] sm:$0xf] %vm44, 0.0
      %47 = vst.msk [vmem:[#allocation3] sm:$0xf] %vm44, 0.0
      %48 = vst.msk [vmem:[#allocation3 + $0x4] sm:$0xf] %vm44, 0.0
      %49 = vst.msk [vmem:[#allocation4] sm:$0xf] %vm44, 0.0
      %50 = vst.msk [vmem:[#allocation4 + $0x4] sm:$0xf] %vm44, 0.0
      %vm51 = vcmask 0
      %52 = vst.msk [vmem:[#allocation5] sm:$0x1] %vm51, 0.0
    $region21: #{tpu_custom_call.1} parent=1 // pred_fallthru
      _
    %v53 = vld [vmem:[#allocation6] sm:$0xff]
    %v54 = vld [vmem:[#allocation6 + $0x8] sm:$0xff]
    %v55 = vld [vmem:[#allocation9] sm:$0xff]
    %v56 = vld [vmem:[#allocation9 + $0x8] sm:$0xff]
    %v57 = vsub.f32 0.0, %v53
    %v58 = vsub.f32 0.0, %v54
    %v59 = vmul.f32 %v57, 1.442695
    %v60 = vpow.pop %v59
    %v61 = vmul.f32 %v58, 1.442695
    %v62 = vpow.pop %v61
    %v63 = vadd.f32 %v60, 1.0
    %v64 = vadd.f32 %v62, 1.0
    %v65 = vrcp.pop %v63
    %v66 = vrcp.pop %v64
    %v67 = vld [vmem:[#allocation2] sm:$0xf]
    %v68 = vld [vmem:[#allocation2 + $0x4] sm:$0xf]
    %v69 = vmul.f32 %v55, %v65
    %v70 = vmul.f32 %v56, %v66
    %v73 = vcombine.high %v69, %v69
    %v74 = vcombine.high %v70, %v70
    %vm77 = vcmask 1043456
    %v78 = vsel %vm77, %v69, 0.0
    %v79 = vsel %vm77, %v73, 0.0
    %v80 = vadd.f32 %v78, %v79
    %81 = vadd.xlane.f32.xlu0 %v80
    %v82 = vpop.xlane.xlu0 %81
    %v83 = vsel %vm77, %v70, 0.0
    %v84 = vsel %vm77, %v74, 0.0
    %v85 = vadd.f32 %v83, %v84
    %86 = vadd.xlane.f32.xlu0 %v85
    %v87 = vpop.xlane.xlu0 %86
    %v88 = vadd.f32 %v67, %v82
    %v89 = vadd.f32 %v68, %v87
    %vm90 = vcmask 3072
    %91 = vst.msk [vmem:[#allocation2] sm:$0xf] %vm90, %v88
    %92 = vst.msk [vmem:[#allocation2 + $0x4] sm:$0xf] %vm90, %v89
    %v93 = vld [vmem:[#allocation3] sm:$0xf]
    %v94 = vld [vmem:[#allocation3 + $0x4] sm:$0xf]
    %v97 = vcombine.high %v55, %v55
    %v98 = vcombine.high %v56, %v56
    %v101 = vsel %vm77, %v55, 0.0
    %v102 = vsel %vm77, %v97, 0.0
    %v103 = vadd.f32 %v101, %v102
    %104 = vadd.xlane.f32.xlu0 %v103
    %v105 = vpop.xlane.xlu0 %104
    %v106 = vsel %vm77, %v56, 0.0
    %v107 = vsel %vm77, %v98, 0.0
    %v108 = vadd.f32 %v106, %v107
    %109 = vadd.xlane.f32.xlu0 %v108
    %v110 = vpop.xlane.xlu0 %109
    %v111 = vadd.f32 %v93, %v105
    %v112 = vadd.f32 %v94, %v110
    %113 = vst.msk [vmem:[#allocation3] sm:$0xf] %vm90, %v111
    %114 = vst.msk [vmem:[#allocation3 + $0x4] sm:$0xf] %vm90, %v112
    %v115 = vld [vmem:[#allocation4] sm:$0xf]
    %v116 = vld [vmem:[#allocation4 + $0x4] sm:$0xf]
    %v119 = vcombine.high %v65, %v65
    %v120 = vcombine.high %v66, %v66
    %v123 = vsel %vm77, %v65, 0.0
    %v124 = vsel %vm77, %v119, 0.0
    %v125 = vadd.f32 %v123, %v124
    %126 = vadd.xlane.f32.xlu0 %v125
    %v127 = vpop.xlane.xlu0 %126
    %v128 = vsel %vm77, %v66, 0.0
    %v129 = vsel %vm77, %v120, 0.0
    %v130 = vadd.f32 %v128, %v129
    %131 = vadd.xlane.f32.xlu0 %v130
    %v132 = vpop.xlane.xlu0 %131
    %v133 = vadd.f32 %v115, %v127
    %v134 = vadd.f32 %v116, %v132
    %135 = vst.msk [vmem:[#allocation4] sm:$0xf] %vm90, %v133
    %136 = vst.msk [vmem:[#allocation4 + $0x4] sm:$0xf] %vm90, %v134
    %v139 = vcombine.high %v53, %v53
    %v140 = vcombine.high %v54, %v54
    %v143 = vsel %vm77, %v53, -inf
    %v144 = vrot.slane %v143, 4
    %v145 = vmax.f32 %v143, %v144
    %v146 = vrot.slane %v145, 2
    %v147 = vmax.f32 %v145, %v146
    %v148 = vrot.slane %v147, 1
    %v149 = vmax.f32 %v147, %v148
    %v150 = vsel %vm77, %v139, -inf
    %v151 = vrot.slane %v150, 4
    %v152 = vmax.f32 %v150, %v151
    %v153 = vrot.slane %v152, 2
    %v154 = vmax.f32 %v152, %v153
    %v155 = vrot.slane %v154, 1
    %v156 = vmax.f32 %v154, %v155
    %v157 = vsel %vm77, %v54, -inf
    %v158 = vrot.slane %v157, 4
    %v159 = vmax.f32 %v157, %v158
    %v160 = vrot.slane %v159, 2
    %v161 = vmax.f32 %v159, %v160
    %v162 = vrot.slane %v161, 1
    %v163 = vmax.f32 %v161, %v162
    %v164 = vsel %vm77, %v140, -inf
    %v165 = vrot.slane %v164, 4
    %v166 = vmax.f32 %v164, %v165
    %v167 = vrot.slane %v166, 2
    %v168 = vmax.f32 %v166, %v167
    %v169 = vrot.slane %v168, 1
    %v170 = vmax.f32 %v168, %v169
    %v175 = vcombine.low %v149, %v156
    %v176 = vcombine.low %v163, %v170
    %v179 = vsub.f32 %v53, %v175
    %v180 = vsub.f32 %v54, %v176
    %v181 = vmul.f32 %v179, 1.442695
    %v182 = vpow.pop %v181
    %v183 = vmul.f32 %v180, 1.442695
    %v184 = vpow.pop %v183
    %v187 = vcombine.high %v182, %v182
    %v188 = vcombine.high %v184, %v184
    %v191 = vsel %vm77, %v182, 0.0
    %v192 = vrot.slane %v191, 4
    %v193 = vadd.f32 %v191, %v192
    %v194 = vrot.slane %v193, 2
    %v195 = vadd.f32 %v193, %v194
    %v196 = vrot.slane %v195, 1
    %v197 = vadd.f32 %v195, %v196
    %v198 = vsel %vm77, %v187, 0.0
    %v199 = vrot.slane %v198, 4
    %v200 = vadd.f32 %v198, %v199
    %v201 = vrot.slane %v200, 2
    %v202 = vadd.f32 %v200, %v201
    %v203 = vrot.slane %v202, 1
    %v204 = vadd.f32 %v202, %v203
    %v205 = vsel %vm77, %v184, 0.0
    %v206 = vrot.slane %v205, 4
    %v207 = vadd.f32 %v205, %v206
    %v208 = vrot.slane %v207, 2
    %v209 = vadd.f32 %v207, %v208
    %v210 = vrot.slane %v209, 1
    %v211 = vadd.f32 %v209, %v210
    %v212 = vsel %vm77, %v188, 0.0
    %v213 = vrot.slane %v212, 4
    %v214 = vadd.f32 %v212, %v213
    %v215 = vrot.slane %v214, 2
    %v216 = vadd.f32 %v214, %v215
    %v217 = vrot.slane %v216, 1
    %v218 = vadd.f32 %v216, %v217
    %v219 = vlog2.pop %v197
    %v220 = vmul.f32 %v219, 0.6931472
    %v221 = vlog2.pop %v204
    %v222 = vmul.f32 %v221, 0.6931472
    %v223 = vlog2.pop %v211
    %v224 = vmul.f32 %v223, 0.6931472
    %v225 = vlog2.pop %v218
    %v226 = vmul.f32 %v225, 0.6931472
    %v227 = vadd.f32 %v149, %v220
    %v228 = vadd.f32 %v156, %v222
    %v229 = vadd.f32 %v163, %v224
    %v230 = vadd.f32 %v170, %v226
    %v235 = vcombine.low %v227, %v228
    %v236 = vcombine.low %v229, %v230
    %v239 = vsub.f32 %v53, %v235
    %v240 = vsub.f32 %v54, %v236
    %v241 = vmul.f32 %v55, %v239
    %v242 = vmul.f32 %v56, %v240
    %v245 = vcombine.high %v241, %v241
    %v246 = vcombine.high %v242, %v242
    %v249 = vsel %vm77, %v241, 0.0
    %v250 = vsel %vm77, %v245, 0.0
    %v251 = vadd.f32 %v249, %v250
    %v252 = vsel %vm77, %v242, 0.0
    %v253 = vadd.f32 %v251, %v252
    %v254 = vsel %vm77, %v246, 0.0
    %v255 = vadd.f32 %v253, %v254
    %256 = vadd.xlane.f32.xlu0 %v255
    %v257 = vpop.xlane.xlu0 %256
    %v258 = vrot.slane %v257, 4
    %v259 = vadd.f32 %v257, %v258
    %v260 = vrot.slane %v259, 2
    %v261 = vadd.f32 %v259, %v260
    %v262 = vrot.slane %v261, 1
    %v263 = vadd.f32 %v261, %v262
    %s264 = vtos %v263
    %s265 = ssub.f32 0.0, %s264
    %v266 = vld [vmem:[#allocation5] sm:$0x1]
    %v267 = vstv %s265
    %v268 = vadd.f32 %v266, %v267
    %vm269 = vcmask 0
    %270 = vst.msk [vmem:[#allocation5] sm:$0x1] %vm269, %v268
    // Predicated region
    $region22: #{tpu_custom_call.1} parent=1 // pred_check
      %p271 = pneg %p40
    $region23: #{tpu_custom_call.1} parent=1 // pred_check_branch
      %273 = sbr.rel (%p271) target = $region25
    $region24: #{tpu_custom_call.1} parent=1 // pred_region
      %v274 = vld [vmem:[#allocation2] sm:$0xf]
      %v275 = vld [vmem:[#allocation2 + $0x4] sm:$0xf]
      %v276 = vld [vmem:[#allocation3] sm:$0xf]
      %v277 = vld [vmem:[#allocation3 + $0x4] sm:$0xf]
      %v278 = vld [vmem:[#allocation4] sm:$0xf]
      %v279 = vld [vmem:[#allocation4 + $0x4] sm:$0xf]
      %v280 = vadd.f32 %v276, %v278
      %v281 = vadd.f32 %v277, %v279
      %v282 = vadd.f32 %v280, 1e-05
      %v283 = vadd.f32 %v281, 1e-05
      %v284 = vmul.f32 %v274, 2.0
      %v285 = vmul.f32 %v275, 2.0
      %v286 = vadd.f32 %v284, 1e-06
      %v287 = vadd.f32 %v285, 1e-06
      %v288 = vrcp.pop %v282
      %v289 = vmul.f32 %v286, %v288
      %v290 = vrcp.pop %v283
      %v291 = vmul.f32 %v287, %v290
      %v292 = vsub.f32 1.0, %v289
      %v293 = vsub.f32 1.0, %v291
      %v294 = vsel %vm90, %v292, 0.0
      %v295 = vsel %vm90, %v293, 0.0
      %v296 = vadd.f32 %v294, %v295
      %297 = vadd.xlane.f32.xlu0 %v296
      %v298 = vpop.xlane.xlu0 %297
      %v299 = vrot.slane %v298, 4
      %v300 = vadd.f32 %v298, %v299
      %v301 = vrot.slane %v300, 2
      %v302 = vadd.f32 %v300, %v301
      %v303 = vrot.slane %v302, 1
      %v304 = vadd.f32 %v302, %v303
      %s305 = vtos %v304
      %s306 = smul.f32 %s305, 0.125
      %v307 = vld [vmem:[#allocation5] sm:$0x1]
      %v308 = vadd.f32 %v307, 0.0
      %s309 = vtos %v308
      %s310 = smul.f32 %s309, 0.001953125
      %s311 = sadd.f32 %s306, %s310
      %v312 = vstv %s311
      %313 = vst.msk [vmem:[#allocation11] sm:$0x1] %vm269, %v312
    $region25: #{tpu_custom_call.1} parent=1 // pred_fallthru
      _
    // Predicated region
    $region26: #{tpu_custom_call.1} parent=1 // pred_check
      _
    $region27: #{tpu_custom_call.1} parent=1 // pred_check_branch
      %315 = sbr.rel (0) target = $region29
    $region28: #{tpu_custom_call.1} parent=1 // pred_region
      %s317 = ssub.s32 16, 16
      %318 = vsyncadd [#allocation8], %s317
      %s320 = sshll.u32 [#allocation11], 4
      %s321 = int_to_ptr.vmem [resolvable:$true] %s320
      %323 = dma.vmem_to_hbm [thread:$0]  %s321, 16, %s2, [#allocation8]
    $region29: #{tpu_custom_call.1} parent=1 // pred_fallthru
      _
    // Predicated region
    $region30: #{tpu_custom_call.1} parent=1 // pred_check
      _
    $region31: #{tpu_custom_call.1} parent=1 // pred_check_branch
      %325 = sbr.rel (0) target = $region33
    $region32: #{tpu_custom_call.1} parent=1 // pred_region
      %326 = dma.done [#allocation8], 16
    $region33: #{tpu_custom_call.1} parent=1 // pred_fallthru
      _
    %327 = vsyncpa [#allocation7], 1
    %328 = vsyncpa [#allocation10], 1
    %329 = vsyncpa [#allocation8], 1

</llo_original>
